<compile_context>
chip_gen: v6e
topology: v6e:2x2x1
jax: 0.10.0
libtpu: 0.0.40
codegen_flags: <defaults>
</compile_context>

<pallas_src>
import functools

import jax
import jax.numpy as jnp
from jax.experimental import pallas as pl
from jax.experimental.pallas import tpu as pltpu

_LANES = 128
_SUBLANES = 8


def _round_up(x, m):
    return (x + m - 1) // m * m


def _aeknn_kernel(x_ref, w_ref, b_ref, base_neg2t_ref, base_norm_ref, out_ref,
                  z_ref, xnorm_ref, *, k):
    # x_ref:          (n_tile, F)      flattened input tile (resident across R axis)
    # w_ref:          (F, D)           encoder weight (x @ W layout, resident)
    # b_ref:          (1, D)   f32     encoder bias (resident)
    # base_neg2t_ref: (D, r_tile)      (-2 * base_data)^T tile (streamed)
    # base_norm_ref:  (1, r_tile) f32  ||base_data||^2 tile (streamed)
    # out_ref:        (n_tile, 128) f32  lane-dense output block; doubles as the
    #                                  running top-K d^2 accumulator (lanes >= K
    #                                  hold +inf until finalize).
    # z_ref:          (n_tile, D)      encoded latents (scratch, matmul dtype)
    # xnorm_ref:      (n_tile, 1) f32  ||z||^2 (scratch)
    r_idx = pl.program_id(1)
    n_r = pl.num_programs(1)

    @pl.when(r_idx == 0)
    def _init():
        # encode once per batch tile: z = x @ W + b  (MXU, f32 accumulation)
        z = jnp.dot(x_ref[...], w_ref[...],
                    preferred_element_type=jnp.float32) + b_ref[...]
        z_ref[...] = z.astype(z_ref.dtype)
        xnorm_ref[...] = jnp.sum(z * z, axis=1, keepdims=True)
        out_ref[...] = jnp.full(out_ref.shape, jnp.inf, dtype=out_ref.dtype)

    # squared-distance expansion for this reference tile
    # cross already carries the -2 factor (folded into base_neg2t at prepare time)
    cross = jnp.dot(z_ref[...], base_neg2t_ref[...],
                    preferred_element_type=jnp.float32)               # (n_tile, r_tile)
    d2 = (base_norm_ref[...] + xnorm_ref[...]) + cross                # (n_tile, r_tile)

    if k == 1:
        # fast path: running min only (no masking loop); finalize keeps lane 0
        tile_min = jnp.min(d2, axis=1, keepdims=True)                 # (n_tile, 1)
        out_ref[...] = jnp.minimum(out_ref[...], tile_min)
    else:
        # merge this tile into the running top-K (smallest d^2, sorted).
        # out_ref is 128 lanes wide -> concat is lane-aligned (no d2 relayout).
        cand = jnp.concatenate([out_ref[...], d2], axis=1)            # (n_tile, 128 + r_tile)
        n, m = cand.shape
        col = jax.lax.broadcasted_iota(jnp.int32, (n, m), 1)
        sel = []
        for _ in range(k):
            mn = jnp.min(cand, axis=1, keepdims=True)                 # (n_tile, 1)
            sel.append(mn)
            # mask exactly one occurrence (lowest-index tie) of the current minimum
            amn = jnp.min(jnp.where(cand == mn, col, m), axis=1, keepdims=True)
            cand = jnp.where(col == amn, jnp.inf, cand)
        sel.append(jnp.full((n, out_ref.shape[1] - k), jnp.inf, jnp.float32))
        out_ref[...] = jnp.concatenate(sel, axis=1)

    @pl.when(r_idx == n_r - 1)
    def _finalize():
        # sqrt only the K selected lanes; clamp tiny negative fp error; zero pad lanes
        lane = jax.lax.broadcasted_iota(jnp.int32, out_ref.shape, 1)
        d = jnp.sqrt(jnp.maximum(out_ref[...], 0.0))
        out_ref[...] = jnp.where(lane < k, d, 0.0)


def aeknn_prepare(w_enc, b_enc, base_data, *, k=1, r_tile=512,
                  matmul_dtype=jnp.float32):
    """Precompute module constants (analogue of AEKNNModel.__init__).

    w_enc:     (F, D) linear-encoder weight (applied as x_flat @ w_enc)
    b_enc:     (D,)   encoder bias
    base_data: (R, D) latent reference set
    """
    r, d_lat = base_data.shape
    assert k <= r, "torch.topk would raise for K > number of reference points"
    assert k <= _LANES, "K is padded into a single 128-lane output block"

    r_tile = min(r_tile, _round_up(r, _LANES))
    assert r_tile % _LANES == 0
    r_pad = _round_up(r, r_tile)

    # fold the -2 of the cross term into the (transposed) reference set, once.
    base_neg2t = (-2.0 * base_data.T).astype(jnp.float32)             # (D, R)
    base_norm = jnp.sum(base_data.astype(jnp.float32) ** 2, axis=1)[None, :]
    if r_pad > r:
        # padded reference columns get +inf norm -> never selected
        base_neg2t = jnp.pad(base_neg2t, ((0, 0), (0, r_pad - r)))
        base_norm = jnp.pad(base_norm, ((0, 0), (0, r_pad - r)),
                            constant_values=jnp.inf)

    return dict(
        w=w_enc.astype(matmul_dtype),                                 # (F, D)
        b=b_enc[None, :].astype(jnp.float32),                         # (1, D)
        base_neg2t=base_neg2t.astype(matmul_dtype),                   # (D, r_pad)
        base_norm=base_norm.astype(jnp.float32),                      # (1, r_pad)
        k=k, r_tile=r_tile, r_pad=r_pad, d_lat=d_lat,
        matmul_dtype=matmul_dtype,
    )


def aeknn_forward(x_nchw, state, *, n_tile=128):
    """Pallas implementation of AEKNNModel.forward -> (N, K) sorted distances."""
    n = x_nchw.shape[0]
    x_flat = x_nchw.reshape(n, -1)                                    # torch .view(n, -1)
    f = x_flat.shape[1]
    d_lat = state["d_lat"]
    k = state["k"]
    r_tile = state["r_tile"]
    r_pad = state["r_pad"]
    assert f == state["w"].shape[0]

    n_tile = min(n_tile, _round_up(n, _SUBLANES))
    n_pad = _round_up(n, n_tile)
    x_flat = jnp.pad(x_flat, ((0, n_pad - n), (0, 0))).astype(state["matmul_dtype"])

    grid = (n_pad // n_tile, r_pad // r_tile)                         # (batch, reduction)

    out = pl.pallas_call(
        functools.partial(_aeknn_kernel, k=k),
        out_shape=jax.ShapeDtypeStruct((n_pad, _LANES), jnp.float32),
        grid=grid,
        in_specs=[
            pl.BlockSpec((n_tile, f), lambda i, r: (i, 0)),           # x: resident per i
            pl.BlockSpec((f, d_lat), lambda i, r: (0, 0)),            # W: resident
            pl.BlockSpec((1, d_lat), lambda i, r: (0, 0)),            # bias: resident
            pl.BlockSpec((d_lat, r_tile), lambda i, r: (0, r)),       # -2*base^T: streamed
            pl.BlockSpec((1, r_tile), lambda i, r: (0, r)),           # ||base||^2: streamed
        ],
        # output block index is independent of r -> resident accumulator across R
        out_specs=pl.BlockSpec((n_tile, _LANES), lambda i, r: (i, 0)),
        scratch_shapes=[
            pltpu.VMEM((n_tile, d_lat), state["matmul_dtype"]),       # z (cached latents)
            pltpu.VMEM((n_tile, 1), jnp.float32),                     # ||z||^2
        ],
        compiler_params=pltpu.CompilerParams(
            dimension_semantics=("parallel", "arbitrary")),
        # NOTE: VMEM use here is ~1-2 MiB; for large n_tile/r_tile/F set
        # vmem_limit_bytes and re-derive tiles against 64 MiB on v7x.
    )(x_flat, state["w"], state["b"], state["base_neg2t"], state["base_norm"])

    return out[:n, :k]


def _reference(x_nchw, w_enc, b_enc, base_data, k):
    """Pure-JAX reference mirroring the PyTorch forward."""
    n = x_nchw.shape[0]
    z = x_nchw.reshape(n, -1) @ w_enc + b_enc                         # encode
    z_norm = jnp.sum(z * z, axis=1)                                   # (N,)
    base_norm = jnp.sum(base_data * base_data, axis=1)                # (R,)
    diffs = base_norm[None, :] + z_norm[:, None] - 2.0 * (z @ base_data.T)
    diffs = jnp.sqrt(jnp.maximum(diffs, 0.0))
    return jnp.sort(diffs, axis=1)[:, :k].astype(jnp.float32)


if __name__ == "__main__":
    # Small, deterministic shapes consistent with the module.
    N, C, H, W = 2, 4, 16, 16        # input images, NCHW
    F = C * H * W                    # 1024 flattened features
    D = 32                           # AE latent dim
    R = 384                          # reference (base_data) points -> 3 R-tiles
    K = 3                            # nearest neighbours requested

    key = jax.random.PRNGKey(0)
    kx, kw, kb, kbase = jax.random.split(key, 4)
    x = jax.random.normal(kx, (N, C, H, W), dtype=jnp.float32)
    w_enc = jax.random.normal(kw, (F, D), dtype=jnp.float32) * 0.02
    b_enc = jax.random.normal(kb, (D,), dtype=jnp.float32) * 0.01
    base_data = jax.random.normal(kbase, (R, D), dtype=jnp.float32)

    ref = _reference(x, w_enc, b_enc, base_data, K)

    # f32 path (exact check) -- r_tile=128 exercises the tiled reduction/accumulator.
    state = aeknn_prepare(w_enc, b_enc, base_data, k=K, r_tile=128)
    out = jax.block_until_ready(aeknn_forward(x, state))
    assert out.shape == (N, K) and out.dtype == jnp.float32
    assert jnp.allclose(out, ref, atol=1e-4, rtol=1e-4), (out, ref)

    # K == 1 fast path (min-only merge, no masking loop).
    state_k1 = aeknn_prepare(w_enc, b_enc, base_data, k=1, r_tile=128)
    out_k1 = jax.block_until_ready(aeknn_forward(x, state_k1))
    assert out_k1.shape == (N, 1)
    assert jnp.allclose(out_k1, ref[:, :1], atol=1e-4, rtol=1e-4), (out_k1, ref[:, :1])

    # bf16 matmul-input path (v6e/v7x MXU); f32 accumulation, loose check.
    state_bf16 = aeknn_prepare(w_enc, b_enc, base_data, k=K, r_tile=128,
                               matmul_dtype=jnp.bfloat16)
    out_bf16 = jax.block_until_ready(aeknn_forward(x, state_bf16))
    assert out_bf16.shape == (N, K)
    assert bool(jnp.all(jnp.isfinite(out_bf16)))
    assert jnp.allclose(out_bf16, ref, atol=5e-2, rtol=5e-2)

    print("KERNEL_OK")
</pallas_src>

<mosaic_0001>
module attributes {stable_mosaic.version = 11 : i64} {
  func.func @_aeknn_kernel(%arg0: i32, %arg1: i32, %arg2: memref<8x1024xf32, #tpu.memory_space<vmem>>, %arg3: memref<1024x32xf32, #tpu.memory_space<vmem>>, %arg4: memref<1x32xf32, #tpu.memory_space<vmem>>, %arg5: memref<32x128xf32, #tpu.memory_space<vmem>>, %arg6: memref<1x128xf32, #tpu.memory_space<vmem>>, %arg7: memref<8x128xf32, #tpu.memory_space<vmem>>, %arg8: memref<8x32xf32, #tpu.memory_space<vmem>>, %arg9: memref<8x1xf32, #tpu.memory_space<vmem>>) attributes {dimension_semantics = [#tpu.dimension_semantics<parallel>, #tpu.dimension_semantics<arbitrary>], iteration_bounds = array<i64: 1, 3>, scalar_prefetch = 0 : i64, scratch_operands = 2 : i64, tpu.core_type = #tpu.core_type<tc>, window_params = [{transform_indices = @transform_0, window_bounds = array<i64: 8, 1024>}, {pipeline_mode = #tpu.pipeline_mode<synchronous>, transform_indices = @transform_1, window_bounds = array<i64: 1024, 32>}, {pipeline_mode = #tpu.pipeline_mode<synchronous>, transform_indices = @transform_2, window_bounds = array<i64: 1, 32>}, {transform_indices = @transform_3, window_bounds = array<i64: 32, 128>}, {transform_indices = @transform_4, window_bounds = array<i64: 1, 128>}, {transform_indices = @transform_5, window_bounds = array<i64: 8, 128>}]} {
    %c0_i32 = arith.constant 0 : i32
    %0 = arith.cmpi eq, %arg1, %c0_i32 : i32
    %1 = arith.extui %0 : i1 to i32
    %c0_i32_0 = arith.constant 0 : i32
    %2 = arith.cmpi ne, %1, %c0_i32_0 : i32
    scf.if %2 {
      %c0_22 = arith.constant 0 : index
      %c0_23 = arith.constant 0 : index
      %47 = vector.load %arg2[%c0_22, %c0_23] : memref<8x1024xf32, #tpu.memory_space<vmem>>, vector<8x1024xf32>
      %c0_24 = arith.constant 0 : index
      %c0_25 = arith.constant 0 : index
      %48 = vector.load %arg3[%c0_24, %c0_25] : memref<1024x32xf32, #tpu.memory_space<vmem>>, vector<1024x32xf32>
      %cst_26 = arith.constant dense<0.000000e+00> : vector<8x32xf32>
      %49 = tpu.matmul %47, %48, %cst_26 {dimension_numbers = #tpu.dot_dimension_numbers<[1], [0], [0], [1], [0, 0, 1, 1], [], []>} : vector<8x1024xf32>, vector<1024x32xf32>, vector<8x32xf32> -> vector<8x32xf32>
      %c0_27 = arith.constant 0 : index
      %c0_28 = arith.constant 0 : index
      %50 = vector.load %arg4[%c0_27, %c0_28] : memref<1x32xf32, #tpu.memory_space<vmem>>, vector<1x32xf32>
      %51 = vector.broadcast %50 : vector<1x32xf32> to vector<8x32xf32>
      %52 = arith.addf %49, %51 : vector<8x32xf32>
      %c0_29 = arith.constant 0 : index
      %c0_30 = arith.constant 0 : index
      %53 = vector.load %arg8[%c0_29, %c0_30] : memref<8x32xf32, #tpu.memory_space<vmem>>, vector<8x32xf32>
      tpu.vector_store %arg8[%c0_29, %c0_30], %52 {strides = array<i32>} : memref<8x32xf32, #tpu.memory_space<vmem>>, vector<8x32xf32>,
      %54 = arith.mulf %52, %52 : vector<8x32xf32>
      %cst_31 = arith.constant dense<0.000000e+00> : vector<8xf32>
      %55 = vector.multi_reduction <add>, %54, %cst_31 [1] : vector<8x32xf32> to vector<8xf32>
      %56 = vector.shape_cast %55 : vector<8xf32> to vector<8x1xf32>
      %c0_32 = arith.constant 0 : index
      %c0_33 = arith.constant 0 : index
      %57 = vector.load %arg9[%c0_32, %c0_33] : memref<8x1xf32, #tpu.memory_space<vmem>>, vector<8x1xf32>
      tpu.vector_store %arg9[%c0_32, %c0_33], %56 {strides = array<i32>} : memref<8x1xf32, #tpu.memory_space<vmem>>, vector<8x1xf32>,
      %cst_34 = arith.constant 0x7F800000 : f32
      %58 = vector.broadcast %cst_34 : f32 to vector<8x128xf32>
      %c0_35 = arith.constant 0 : index
      %c0_36 = arith.constant 0 : index
      %59 = vector.load %arg7[%c0_35, %c0_36] : memref<8x128xf32, #tpu.memory_space<vmem>>, vector<8x128xf32>
      tpu.vector_store %arg7[%c0_35, %c0_36], %58 {strides = array<i32>} : memref<8x128xf32, #tpu.memory_space<vmem>>, vector<8x128xf32>,
    } else {
    }
    %c0 = arith.constant 0 : index
    %c0_1 = arith.constant 0 : index
    %3 = vector.load %arg8[%c0, %c0_1] : memref<8x32xf32, #tpu.memory_space<vmem>>, vector<8x32xf32>
    %c0_2 = arith.constant 0 : index
    %c0_3 = arith.constant 0 : index
    %4 = vector.load %arg5[%c0_2, %c0_3] : memref<32x128xf32, #tpu.memory_space<vmem>>, vector<32x128xf32>
    %cst = arith.constant dense<0.000000e+00> : vector<8x128xf32>
    %5 = tpu.matmul %3, %4, %cst {dimension_numbers = #tpu.dot_dimension_numbers<[1], [0], [0], [1], [0, 0, 1, 1], [], []>} : vector<8x32xf32>, vector<32x128xf32>, vector<8x128xf32> -> vector<8x128xf32>
    %c0_4 = arith.constant 0 : index
    %c0_5 = arith.constant 0 : index
    %6 = vector.load %arg6[%c0_4, %c0_5] : memref<1x128xf32, #tpu.memory_space<vmem>>, vector<1x128xf32>
    %c0_6 = arith.constant 0 : index
    %c0_7 = arith.constant 0 : index
    %7 = vector.load %arg9[%c0_6, %c0_7] : memref<8x1xf32, #tpu.memory_space<vmem>>, vector<8x1xf32>
    %8 = vector.broadcast %6 : vector<1x128xf32> to vector<8x128xf32>
    %9 = vector.broadcast %7 : vector<8x1xf32> to vector<8x128xf32>
    %10 = arith.addf %8, %9 : vector<8x128xf32>
    %11 = arith.addf %10, %5 : vector<8x128xf32>
    %c0_8 = arith.constant 0 : index
    %c0_9 = arith.constant 0 : index
    %12 = vector.load %arg7[%c0_8, %c0_9] : memref<8x128xf32, #tpu.memory_space<vmem>>, vector<8x128xf32>
    %13 = tpu.concatenate %12, %11 in 1 : vector<8x128xf32>, vector<8x128xf32> -> vector<8x256xf32>
    %14 = tpu.iota {dimensions = array<i32: 1>} : vector<8x256xi32>
    %cst_10 = arith.constant dense<0x7F800000> : vector<8xf32>
    %15 = vector.multi_reduction <minimumf>, %13, %cst_10 [1] : vector<8x256xf32> to vector<8xf32>
    %16 = vector.shape_cast %15 : vector<8xf32> to vector<8x1xf32>
    %17 = vector.broadcast %16 : vector<8x1xf32> to vector<8x256xf32>
    %18 = arith.cmpf oeq, %13, %17 : vector<8x256xf32>
    %c256_i32 = arith.constant 256 : i32
    %19 = vector.broadcast %c256_i32 : i32 to vector<8x256xi32>
    %20 = arith.select %18, %14, %19 : vector<8x256xi1>, vector<8x256xi32>
    %cst_11 = arith.constant dense<2147483647> : vector<8xi32>
    %21 = vector.multi_reduction <minsi>, %20, %cst_11 [1] : vector<8x256xi32> to vector<8xi32>
    %22 = vector.shape_cast %21 : vector<8xi32> to vector<8x1xi32>
    %23 = vector.broadcast %22 : vector<8x1xi32> to vector<8x256xi32>
    %24 = arith.cmpi eq, %14, %23 : vector<8x256xi32>
    %cst_12 = arith.constant 0x7F800000 : f32
    %25 = vector.broadcast %cst_12 : f32 to vector<8x256xf32>
    %26 = arith.select %24, %25, %13 : vector<8x256xi1>, vector<8x256xf32>
    %cst_13 = arith.constant dense<0x7F800000> : vector<8xf32>
    %27 = vector.multi_reduction <minimumf>, %26, %cst_13 [1] : vector<8x256xf32> to vector<8xf32>
    %28 = vector.shape_cast %27 : vector<8xf32> to vector<8x1xf32>
    %29 = vector.broadcast %28 : vector<8x1xf32> to vector<8x256xf32>
    %30 = arith.cmpf oeq, %26, %29 : vector<8x256xf32>
    %c256_i32_14 = arith.constant 256 : i32
    %31 = vector.broadcast %c256_i32_14 : i32 to vector<8x256xi32>
    %32 = arith.select %30, %14, %31 : vector<8x256xi1>, vector<8x256xi32>
    %cst_15 = arith.constant dense<2147483647> : vector<8xi32>
    %33 = vector.multi_reduction <minsi>, %32, %cst_15 [1] : vector<8x256xi32> to vector<8xi32>
    %34 = vector.shape_cast %33 : vector<8xi32> to vector<8x1xi32>
    %35 = vector.broadcast %34 : vector<8x1xi32> to vector<8x256xi32>
    %36 = arith.cmpi eq, %14, %35 : vector<8x256xi32>
    %cst_16 = arith.constant 0x7F800000 : f32
    %37 = vector.broadcast %cst_16 : f32 to vector<8x256xf32>
    %38 = arith.select %36, %37, %26 : vector<8x256xi1>, vector<8x256xf32>
    %cst_17 = arith.constant dense<0x7F800000> : vector<8xf32>
    %39 = vector.multi_reduction <minimumf>, %38, %cst_17 [1] : vector<8x256xf32> to vector<8xf32>
    %40 = vector.shape_cast %39 : vector<8xf32> to vector<8x1xf32>
    %cst_18 = arith.constant 0x7F800000 : f32
    %41 = vector.broadcast %cst_18 : f32 to vector<8x125xf32>
    %42 = tpu.concatenate %16, %28, %40, %41 in 1 : vector<8x1xf32>, vector<8x1xf32>, vector<8x1xf32>, vector<8x125xf32> -> vector<8x128xf32>
    %c0_19 = arith.constant 0 : index
    %c0_20 = arith.constant 0 : index
    %43 = vector.load %arg7[%c0_19, %c0_20] : memref<8x128xf32, #tpu.memory_space<vmem>>, vector<8x128xf32>
    tpu.vector_store %arg7[%c0_19, %c0_20], %42 {strides = array<i32>} : memref<8x128xf32, #tpu.memory_space<vmem>>, vector<8x128xf32>,
    %c2_i32 = arith.constant 2 : i32
    %44 = arith.cmpi eq, %arg1, %c2_i32 : i32
    %45 = arith.extui %44 : i1 to i32
    %c0_i32_21 = arith.constant 0 : i32
    %46 = arith.cmpi ne, %45, %c0_i32_21 : i32
    scf.if %46 {
      %47 = tpu.iota {dimensions = array<i32: 1>} : vector<8x128xi32>
      %c0_22 = arith.constant 0 : index
      %c0_23 = arith.constant 0 : index
      %48 = vector.load %arg7[%c0_22, %c0_23] : memref<8x128xf32, #tpu.memory_space<vmem>>, vector<8x128xf32>
      %cst_24 = arith.constant 0.000000e+00 : f32
      %49 = vector.broadcast %cst_24 : f32 to vector<8x128xf32>
      %50 = arith.maximumf %48, %49 : vector<8x128xf32>
      %51 = math.sqrt %50 : vector<8x128xf32>
      %c3_i32 = arith.constant 3 : i32
      %52 = vector.broadcast %c3_i32 : i32 to vector<8x128xi32>
      %53 = arith.cmpi slt, %47, %52 : vector<8x128xi32>
      %cst_25 = arith.constant 0.000000e+00 : f32
      %54 = vector.broadcast %cst_25 : f32 to vector<8x128xf32>
      %55 = arith.select %53, %51, %54 : vector<8x128xi1>, vector<8x128xf32>
      %c0_26 = arith.constant 0 : index
      %c0_27 = arith.constant 0 : index
      %56 = vector.load %arg7[%c0_26, %c0_27] : memref<8x128xf32, #tpu.memory_space<vmem>>, vector<8x128xf32>
      tpu.vector_store %arg7[%c0_26, %c0_27], %55 {strides = array<i32>} : memref<8x128xf32, #tpu.memory_space<vmem>>, vector<8x128xf32>,
    } else {
    }
    return
  }
  func.func @transform_0(%arg0: i32, %arg1: i32) -> (i32, i32) {
    %c0_i32 = arith.constant 0 : i32
    %c0_i32_0 = arith.constant 0 : i32
    return %arg0, %c0_i32 : i32, i32
  }
  func.func @transform_1(%arg0: i32, %arg1: i32) -> (i32, i32) {
    %c0_i32 = arith.constant 0 : i32
    %c0_i32_0 = arith.constant 0 : i32
    %c0_i32_1 = arith.constant 0 : i32
    return %c0_i32, %c0_i32_0 : i32, i32
  }
  func.func @transform_2(%arg0: i32, %arg1: i32) -> (i32, i32) {
    %c0_i32 = arith.constant 0 : i32
    %c0_i32_0 = arith.constant 0 : i32
    %c0_i32_1 = arith.constant 0 : i32
    return %c0_i32, %c0_i32_0 : i32, i32
  }
  func.func @transform_3(%arg0: i32, %arg1: i32) -> (i32, i32) {
    %c0_i32 = arith.constant 0 : i32
    %c0_i32_0 = arith.constant 0 : i32
    return %c0_i32, %arg1 : i32, i32
  }
  func.func @transform_4(%arg0: i32, %arg1: i32) -> (i32, i32) {
    %c0_i32 = arith.constant 0 : i32
    %c0_i32_0 = arith.constant 0 : i32
    return %c0_i32, %arg1 : i32, i32
  }
  func.func @transform_5(%arg0: i32, %arg1: i32) -> (i32, i32) {
    %c0_i32 = arith.constant 0 : i32
    %c0_i32_0 = arith.constant 0 : i32
    return %arg0, %c0_i32 : i32, i32
  }
}

</mosaic_0001>

<llo_original>
// kernel: tpu_custom_call.1
$region0: #{tpu_custom_call.1}
  #allocation0 [shape = 'u32[]', space=smem, size = 0x4, offset = 0x4, fixed_abs, tag = 'smem constant byte address 0x4 - core index']
  #allocation1 [shape = 'u32[144,128]{1,0:T(1,128)}', space=vmem, size = 0x12000, scoped, tag = 'internal scratch']
  #allocation2 [shape = 'f32[8,32]{1,0:T(8,128)}', space=vmem, size = 0x1000, scoped, tag = 'scratch operand']
  #allocation3 [shape = 'f32[8,1]{1,0:T(8,128)}', space=vmem, size = 0x1000, scoped, tag = 'scratch operand']
  %s0 = inlined_call_operand.vmem [shape: f32[8,1024], index: 0, kind: input, shape index: {}]
  %s1 = inlined_call_operand.vmem [shape: f32[1024,32], index: 1, kind: input, shape index: {}]
  %s2 = inlined_call_operand.vmem [shape: f32[1,32], index: 2, kind: input, shape index: {}]
  %s3 = inlined_call_operand.vmem [shape: f32[32,384], index: 3, kind: input, shape index: {}]
  %s4 = inlined_call_operand.vmem [shape: f32[1,384], index: 4, kind: input, shape index: {}]
  %s5 = inlined_call_operand.hbm [shape: f32[8,128], index: 5, kind: output, shape index: {}]
  %s6 = sld [smem:[#allocation0]]
  $region99: #{tpu_custom_call.1} parent=0
    _
  %s8 = ssub.s32 1, %s6
  %s9 = scalar_select 0, %s8, %s6
  $region1: #{tpu_custom_call.1} parent=0
    #allocation4 [shape = 'u8[32768]{0}', space=vmem, size = 0x8000, scoped, tag = 'input window, operand 3']
    #allocation5 [shape = 'u8[4096]{0}', space=vmem, size = 0x1000, scoped, tag = 'output window, operand 0, single buffered']
    #allocation6 [shape = 's32[2]{0}', space=sflag, size = 0x8, scoped, tag = 'scoped memory for tpu_custom_call.1']
    %10 = vsyncpa [#allocation6], 0
    loop: start=0, step=1, limit=5
    $region2: #{tpu_custom_call.1} parent=1 // loop_pre_header
      _
    $region3: #{tpu_custom_call.1} parent=1 // loop_header
      %s12 = sphi 0, %s16
      %p13 = scmp.ge.s32.totalorder %s12, 5
      %s19 = sphi 0, %s31
      %s20 = sphi 0, %s27
      %s21 = sphi 0, %s19
      %s22 = sphi 0, %s20
      %s23 = sphi 0, %s21
      %s24 = sphi 0, %s22
      %s34 = sphi 0, %s36
      %s37 = sphi 0, %s34
      %s38 = sphi 0, %s37
      %s54 = sphi 0, %s38
      %s58 = sphi 0, %s58
      %s60 = sphi 0, %s58
      %s61 = sphi 0, %s60
      %s75 = sphi 0, %s61
      %s79 = sphi 0, %s79
      %s81 = sphi 0, %s79
      %s82 = sphi 0, %s81
      %s96 = sphi 0, %s82
      %s102 = sphi 0, %s104
      %s105 = sphi 0, %s102
      %s106 = sphi 0, %s105
      %s122 = sphi 0, %s106
      %s128 = sphi 0, %s130
      %s131 = sphi 0, %s128
      %s132 = sphi 0, %s131
      %s148 = sphi 0, %s132
      %s154 = sphi 0, %s156
      %s157 = sphi 0, %s154
      %s158 = sphi 0, %s157
      %s174 = sphi 0, %s158
    $region4: #{tpu_custom_call.1} parent=1 // loop_header_branch
      %15 = sbr.rel (%p13) target = $region8
    $region5: #{tpu_custom_call.1} parent=1 // loop_body
      %s17 = ssub.s32 %s12, 1
      %s18 = ssub.s32 %s12, 2
      %s25 = sadd.s32 1, %s20
      %p26 = scmp.ge.s32.totalorder %s25, 3
      %s27 = scalar_select %p26, 0, %s25
      %s28 = sadd.s32 1, %s19
      %s29 = scalar_select %p26, %s28, %s19
      %p30 = scmp.ge.s32.totalorder %s29, 1
      %s31 = scalar_select %p30, 0, %s29
      %s32 = ssub.s32 %s19, %s31
      %p33 = scmp.eq.s32.totalorder %s32, 0
      %s35 = sadd.s32 %s34, 1
      %s36 = scalar_select %p33, %s34, %s35
      %p39 = pneg %p33
      %p40 = scmp.eq.s32.totalorder %s12, 2
      %p41 = por %p39, %p40
      %p42 = scmp.ne.s32.totalorder %s34, %s37
      %p43 = scmp.eq.s32.totalorder %s12, 0
      %p44 = por %p42, %p43
      %p45 = scmp.ne.s32.totalorder %s34, %s37
      %p46 = scmp.eq.s32.totalorder %s17, 2
      %p47 = por %p45, %p46
      %p48 = scmp.ne.s32.totalorder %s37, %s38
      %p49 = scmp.eq.s32.totalorder %s17, 0
      %p50 = por %p48, %p49
      %p51 = scmp.ne.s32.totalorder %s37, %s38
      %p52 = scmp.eq.s32.totalorder %s18, 2
      %p53 = por %p51, %p52
      %p55 = scmp.ne.s32.totalorder %s38, %s54
      %p56 = scmp.eq.s32.totalorder %s18, 0
      %p57 = por %p55, %p56
      %s59 = sadd.s32 %s58, 1
      %p62 = scmp.eq.s32.totalorder %s12, 2
      %p63 = scmp.ne.s32.totalorder %s58, %s60
      %p64 = scmp.eq.s32.totalorder %s12, 0
      %p65 = por %p63, %p64
      %p66 = scmp.ne.s32.totalorder %s58, %s60
      %p67 = scmp.eq.s32.totalorder %s17, 2
      %p68 = por %p66, %p67
      %p69 = scmp.ne.s32.totalorder %s60, %s61
      %p70 = scmp.eq.s32.totalorder %s17, 0
      %p71 = por %p69, %p70
      %p72 = scmp.ne.s32.totalorder %s60, %s61
      %p73 = scmp.eq.s32.totalorder %s18, 2
      %p74 = por %p72, %p73
      %p76 = scmp.ne.s32.totalorder %s61, %s75
      %p77 = scmp.eq.s32.totalorder %s18, 0
      %p78 = por %p76, %p77
      %s80 = sadd.s32 %s79, 1
      %p83 = scmp.eq.s32.totalorder %s12, 2
      %p84 = scmp.ne.s32.totalorder %s79, %s81
      %p85 = scmp.eq.s32.totalorder %s12, 0
      %p86 = por %p84, %p85
      %p87 = scmp.ne.s32.totalorder %s79, %s81
      %p88 = scmp.eq.s32.totalorder %s17, 2
      %p89 = por %p87, %p88
      %p90 = scmp.ne.s32.totalorder %s81, %s82
      %p91 = scmp.eq.s32.totalorder %s17, 0
      %p92 = por %p90, %p91
      %p93 = scmp.ne.s32.totalorder %s81, %s82
      %p94 = scmp.eq.s32.totalorder %s18, 2
      %p95 = por %p93, %p94
      %p97 = scmp.ne.s32.totalorder %s82, %s96
      %p98 = scmp.eq.s32.totalorder %s18, 0
      %p99 = por %p97, %p98
      %s100 = ssub.s32 %s20, %s27
      %p101 = scmp.eq.s32.totalorder %s100, 0
      %s103 = sadd.s32 %s102, 1
      %s104 = scalar_select %p101, %s102, %s103
      %p107 = pneg %p101
      %p108 = scmp.eq.s32.totalorder %s12, 2
      %p109 = por %p107, %p108
      %p110 = scmp.ne.s32.totalorder %s102, %s105
      %p111 = scmp.eq.s32.totalorder %s12, 0
      %p112 = por %p110, %p111
      %p113 = scmp.ne.s32.totalorder %s102, %s105
      %p114 = scmp.eq.s32.totalorder %s17, 2
      %p115 = por %p113, %p114
      %p116 = scmp.ne.s32.totalorder %s105, %s106
      %p117 = scmp.eq.s32.totalorder %s17, 0
      %p118 = por %p116, %p117
      %p119 = scmp.ne.s32.totalorder %s105, %s106
      %p120 = scmp.eq.s32.totalorder %s18, 2
      %p121 = por %p119, %p120
      %p123 = scmp.ne.s32.totalorder %s106, %s122
      %p124 = scmp.eq.s32.totalorder %s18, 0
      %p125 = por %p123, %p124
      %s126 = ssub.s32 %s20, %s27
      %p127 = scmp.eq.s32.totalorder %s126, 0
      %s129 = sadd.s32 %s128, 1
      %s130 = scalar_select %p127, %s128, %s129
      %p133 = pneg %p127
      %p134 = scmp.eq.s32.totalorder %s12, 2
      %p135 = por %p133, %p134
      %p136 = scmp.ne.s32.totalorder %s128, %s131
      %p137 = scmp.eq.s32.totalorder %s12, 0
      %p138 = por %p136, %p137
      %p139 = scmp.ne.s32.totalorder %s128, %s131
      %p140 = scmp.eq.s32.totalorder %s17, 2
      %p141 = por %p139, %p140
      %p142 = scmp.ne.s32.totalorder %s131, %s132
      %p143 = scmp.eq.s32.totalorder %s17, 0
      %p144 = por %p142, %p143
      %p145 = scmp.ne.s32.totalorder %s131, %s132
      %p146 = scmp.eq.s32.totalorder %s18, 2
      %p147 = por %p145, %p146
      %p149 = scmp.ne.s32.totalorder %s132, %s148
      %p150 = scmp.eq.s32.totalorder %s18, 0
      %p151 = por %p149, %p150
      %s152 = ssub.s32 %s19, %s31
      %p153 = scmp.eq.s32.totalorder %s152, 0
      %s155 = sadd.s32 %s154, 1
      %s156 = scalar_select %p153, %s154, %s155
      %p159 = pneg %p153
      %p160 = scmp.eq.s32.totalorder %s12, 2
      %p161 = por %p159, %p160
      %p162 = scmp.ne.s32.totalorder %s154, %s157
      %p163 = scmp.eq.s32.totalorder %s12, 0
      %p164 = por %p162, %p163
      %p165 = scmp.ne.s32.totalorder %s154, %s157
      %p166 = scmp.eq.s32.totalorder %s17, 2
      %p167 = por %p165, %p166
      %p168 = scmp.ne.s32.totalorder %s157, %s158
      %p169 = scmp.eq.s32.totalorder %s17, 0
      %p170 = por %p168, %p169
      %p171 = scmp.ne.s32.totalorder %s157, %s158
      %p172 = scmp.eq.s32.totalorder %s18, 2
      %p173 = por %p171, %p172
      %p175 = scmp.ne.s32.totalorder %s158, %s174
      %p176 = scmp.eq.s32.totalorder %s18, 0
      %p177 = por %p175, %p176
      %p178 = scmp.le.s32.totalorder 1, %s12
      %p179 = scmp.lt.s32.totalorder %s12, 4
      %p180 = pnand %p178, %p179
      %p181 = pneg %p180
      // Predicated region
      $region9: #{tpu_custom_call.1} parent=5 // pred_check
        _
      $region10: #{tpu_custom_call.1} parent=5 // pred_check_branch
        %183 = sbr.rel (%p180) target = $region12
      $region11: #{tpu_custom_call.1} parent=5 // pred_region
        %s184 = ssub.s32 %s12, 1
        // Predicated region
        $region13: #{tpu_custom_call.1} parent=11 // pred_check
          %p185 = pneg %p50
        $region14: #{tpu_custom_call.1} parent=11 // pred_check_branch
          %187 = sbr.rel (%p185) target = $region16
        $region15: #{tpu_custom_call.1} parent=11 // pred_region
          %p188 = scmp.lt.s32.totalorder %s21, 0
          %s189 = scalar_select %p188, %s21, 0
          %s190 = smul.addr %s189, 8
          %s191 = smul.addr %s190, 8
          %s192 = scalar_lea.vmem %s0, %s191
        $region16: #{tpu_custom_call.1} parent=11 // pred_fallthru
          _
        // Predicated region
        $region17: #{tpu_custom_call.1} parent=11 // pred_check
          %p193 = pneg %p71
        $region18: #{tpu_custom_call.1} parent=11 // pred_check_branch
          %195 = sbr.rel (%p193) target = $region20
        $region19: #{tpu_custom_call.1} parent=11 // pred_region
          _
        $region20: #{tpu_custom_call.1} parent=11 // pred_fallthru
          _
        // Predicated region
        $region21: #{tpu_custom_call.1} parent=11 // pred_check
          %p196 = pneg %p92
        $region22: #{tpu_custom_call.1} parent=11 // pred_check_branch
          %198 = sbr.rel (%p196) target = $region24
        $region23: #{tpu_custom_call.1} parent=11 // pred_region
          _
        $region24: #{tpu_custom_call.1} parent=11 // pred_fallthru
          _
      $region12: #{tpu_custom_call.1} parent=5 // pred_fallthru
        _
      %p199 = scmp.lt.s32.totalorder %s12, 3
      // Predicated region
      $region25: #{tpu_custom_call.1} parent=5 // pred_check
        %p200 = pneg %p199
      $region26: #{tpu_custom_call.1} parent=5 // pred_check_branch
        %202 = sbr.rel (%p200) target = $region28
      $region27: #{tpu_custom_call.1} parent=5 // pred_region
        // Predicated region
        $region29: #{tpu_custom_call.1} parent=27 // pred_check
          %p203 = pneg %p112
        $region30: #{tpu_custom_call.1} parent=27 // pred_check_branch
          %205 = sbr.rel (%p203) target = $region32
        $region31: #{tpu_custom_call.1} parent=27 // pred_region
          %s206 = sand.u32 %s102, 1
          %s207 = sand.u32 %s102, 1
          %s208 = smul.addr %s207, 32
          %s209 = scalar_lea.vmem [#allocation4], %s208
          %s210 = smul.addr %s20, 8
          %s211 = scalar_lea.vmem %s3, %s210
          // Predicated region
          $region33: #{tpu_custom_call.1} parent=31 // pred_check
            _
          $region34: #{tpu_custom_call.1} parent=31 // pred_check_branch
            %213 = sbr.rel (0) target = $region36
          $region35: #{tpu_custom_call.1} parent=31 // pred_region
            // Predicated region
            $region37: #{tpu_custom_call.1} parent=35 // pred_check
              _
            $region38: #{tpu_custom_call.1} parent=35 // pred_check_branch
              %215 = sbr.rel (0) target = $region40
            $region39: #{tpu_custom_call.1} parent=35 // pred_region
              // Predicated region
              $region52: #{tpu_custom_call.1} parent=39 // pred_check
                _
              $region53: #{tpu_custom_call.1} parent=39 // pred_check_branch
                %237 = sbr.rel (0) target = $region55
              $region54: #{tpu_custom_call.1} parent=39 // pred_region
                loop: start=0, step=1, limit=1
                $region56: #{tpu_custom_call.1} parent=54 // loop_pre_header
                  _
                $region57: #{tpu_custom_call.1} parent=54 // loop_header
                  %s239 = sphi 0, %s243
                  %p240 = scmp.ge.s32.totalorder %s239, 1
                  %s244 = sphi %s211, %s211
                  %s245 = sphi %s209, %s209
                $region58: #{tpu_custom_call.1} parent=54 // loop_header_branch
                  %242 = sbr.rel (%p240) target = $region62
                $region59: #{tpu_custom_call.1} parent=54 // loop_body
                  %v246 = vld [vmem:[%s244] sm:$0xff]
                  %247 = vst [vmem:[%s245] sm:$0xff] %v246
                  %v248 = vld [vmem:[%s244 + $0x18] sm:$0xff]
                  %249 = vst [vmem:[%s245 + $0x8] sm:$0xff] %v248
                  %v250 = vld [vmem:[%s244 + $0x30] sm:$0xff]
                  %251 = vst [vmem:[%s245 + $0x10] sm:$0xff] %v250
                  %v252 = vld [vmem:[%s244 + $0x48] sm:$0xff]
                  %253 = vst [vmem:[%s245 + $0x18] sm:$0xff] %v252
                $region60: #{tpu_custom_call.1} parent=54 // loop_footer
                  %s243 = sadd.s32 1, %s239
                $region61: #{tpu_custom_call.1} parent=54 // loop_footer_branch
                  %238 = sbr.rel target = $region57
                $region62: #{tpu_custom_call.1} parent=54 // loop_exit
                  _
              $region55: #{tpu_custom_call.1} parent=39 // pred_fallthru
                _
              // Predicated region
              $region63: #{tpu_custom_call.1} parent=39 // pred_check
                _
              $region64: #{tpu_custom_call.1} parent=39 // pred_check_branch
                %255 = sbr.rel target = $region66
              $region65: #{tpu_custom_call.1} parent=39 // pred_region
                _
              $region66: #{tpu_custom_call.1} parent=39 // pred_fallthru
                _
            $region40: #{tpu_custom_call.1} parent=35 // pred_fallthru
              _
            // Predicated region
            $region41: #{tpu_custom_call.1} parent=35 // pred_check
              _
            $region42: #{tpu_custom_call.1} parent=35 // pred_check_branch
              %217 = sbr.rel target = $region44
            $region43: #{tpu_custom_call.1} parent=35 // pred_region
              %s219 = ssub.s32 256, 1
              loop: start=0, step=1, limit=1
              $region45: #{tpu_custom_call.1} parent=43 // loop_pre_header
                _
              $region46: #{tpu_custom_call.1} parent=43 // loop_header
                %s221 = sphi 0, %s225
                %p222 = scmp.ge.s32.totalorder %s221, 1
                %s226 = sphi %s211, %s211
                %s227 = sphi %s209, %s209
              $region47: #{tpu_custom_call.1} parent=43 // loop_header_branch
                %224 = sbr.rel (%p222) target = $region51
              $region48: #{tpu_custom_call.1} parent=43 // loop_body
                %v228 = vld [vmem:[%s226] sm:%s219]
                %229 = vst [vmem:[%s227] sm:%s219] %v228
                %v230 = vld [vmem:[%s226 + $0x18] sm:%s219]
                %231 = vst [vmem:[%s227 + $0x8] sm:%s219] %v230
                %v232 = vld [vmem:[%s226 + $0x30] sm:%s219]
                %233 = vst [vmem:[%s227 + $0x10] sm:%s219] %v232
                %v234 = vld [vmem:[%s226 + $0x48] sm:%s219]
                %235 = vst [vmem:[%s227 + $0x18] sm:%s219] %v234
              $region49: #{tpu_custom_call.1} parent=43 // loop_footer
                %s225 = sadd.s32 1, %s221
              $region50: #{tpu_custom_call.1} parent=43 // loop_footer_branch
                %220 = sbr.rel target = $region46
              $region51: #{tpu_custom_call.1} parent=43 // loop_exit
                _
            $region44: #{tpu_custom_call.1} parent=35 // pred_fallthru
              _
          $region36: #{tpu_custom_call.1} parent=31 // pred_fallthru
            _
          %256 = vnop
        $region32: #{tpu_custom_call.1} parent=27 // pred_fallthru
          _
        // Predicated region
        $region67: #{tpu_custom_call.1} parent=27 // pred_check
          %p257 = pneg %p138
        $region68: #{tpu_custom_call.1} parent=27 // pred_check_branch
          %259 = sbr.rel (%p257) target = $region70
        $region69: #{tpu_custom_call.1} parent=27 // pred_region
          %p260 = scmp.lt.s32.totalorder %s20, 2
          %s261 = scalar_select %p260, %s20, 2
          %s262 = scalar_lea.vmem %s4, %s261
        $region70: #{tpu_custom_call.1} parent=27 // pred_fallthru
          _
      $region28: #{tpu_custom_call.1} parent=5 // pred_fallthru
        _
      %p263 = scmp.le.s32.totalorder 1, %s12
      %p264 = scmp.lt.s32.totalorder %s12, 4
      %p265 = pnand %p263, %p264
      %p266 = pneg %p265
      // Predicated region
      $region71: #{tpu_custom_call.1} parent=5 // pred_check
        _
      $region72: #{tpu_custom_call.1} parent=5 // pred_check_branch
        %268 = sbr.rel (%p265) target = $region74
      $region73: #{tpu_custom_call.1} parent=5 // pred_region
        %s269 = ssub.s32 %s12, 1
        %s270 = sand.u32 %s105, 1
        %s271 = sand.u32 %s105, 1
        %s272 = smul.addr %s271, 32
        %s273 = scalar_lea.vmem [#allocation4], %s272
        // Predicated region
        $region75: #{tpu_custom_call.1} parent=73 // pred_check
          %p274 = pneg %p118
        $region76: #{tpu_custom_call.1} parent=73 // pred_check_branch
          %276 = sbr.rel (%p274) target = $region78
        $region77: #{tpu_custom_call.1} parent=73 // pred_region
          _
        $region78: #{tpu_custom_call.1} parent=73 // pred_fallthru
          _
        %p277 = scmp.lt.s32.totalorder %s21, 0
        %s278 = scalar_select %p277, %s21, 0
        %s279 = smul.addr %s278, 8
        %s280 = smul.addr %s279, 8
        %s281 = scalar_lea.vmem %s0, %s280
        %p282 = pneg %p50
        %p283 = pneg %p47
        %p284 = pneg %p71
        %p285 = pneg %p68
        %p286 = pneg %p92
        %p287 = pneg %p89
        %s288 = sand.u32 %s105, 1
        %s289 = sand.u32 %s105, 1
        %s290 = smul.addr %s289, 32
        %s291 = scalar_lea.vmem [#allocation4], %s290
        %p292 = pneg %p118
        %p293 = pneg %p115
        %p294 = scmp.lt.s32.totalorder %s22, 2
        %s295 = scalar_select %p294, %s22, 2
        %s296 = scalar_lea.vmem %s4, %s295
        %p297 = pneg %p144
        %p298 = pneg %p141
        %p299 = pneg %p170
        %p300 = pneg %p167
        %p301 = scmp.lt.s32.totalorder %s21, 0
        %s302 = scalar_select %p301, %s21, 0
        %s303 = smul.addr %s302, 8
        %s304 = smul.addr %s303, 8
        %s305 = scalar_lea.vmem %s0, %s304
        %p306 = scmp.lt.s32.totalorder %s22, 2
        %s307 = scalar_select %p306, %s22, 2
        %s308 = scalar_lea.vmem %s4, %s307
        %p309 = scmp.eq.s32.totalorder %s22, 0
        // Predicated region
        $region79: #{tpu_custom_call.1} parent=73 // pred_check
          %p310 = pneg %p309
        $region80: #{tpu_custom_call.1} parent=73 // pred_check_branch
          %312 = sbr.rel (%p310) target = $region82
        $region81: #{tpu_custom_call.1} parent=73 // pred_region
          %v313 = vld [vmem:[%s305] sm:$0xff]
          %v314 = vld [vmem:[%s305 + $0x8] sm:$0xff]
          %v315 = vld [vmem:[%s305 + $0x10] sm:$0xff]
          %v316 = vld [vmem:[%s305 + $0x18] sm:$0xff]
          %v317 = vld [vmem:[%s305 + $0x20] sm:$0xff]
          %v318 = vld [vmem:[%s305 + $0x28] sm:$0xff]
          %v319 = vld [vmem:[%s305 + $0x30] sm:$0xff]
          %v320 = vld [vmem:[%s305 + $0x38] sm:$0xff]
          %v321 = vld [vmem:[%s1] sm:$0xff]
          %v322 = vld [vmem:[%s1 + $0x8] sm:$0xff]
          %v323 = vld [vmem:[%s1 + $0x10] sm:$0xff]
          %v324 = vld [vmem:[%s1 + $0x18] sm:$0xff]
          %v325 = vld [vmem:[%s1 + $0x20] sm:$0xff]
          %v326 = vld [vmem:[%s1 + $0x28] sm:$0xff]
          %v327 = vld [vmem:[%s1 + $0x30] sm:$0xff]
          %v328 = vld [vmem:[%s1 + $0x38] sm:$0xff]
          %v329 = vld [vmem:[%s1 + $0x40] sm:$0xff]
          %v330 = vld [vmem:[%s1 + $0x48] sm:$0xff]
          %v331 = vld [vmem:[%s1 + $0x50] sm:$0xff]
          %v332 = vld [vmem:[%s1 + $0x58] sm:$0xff]
          %v333 = vld [vmem:[%s1 + $0x60] sm:$0xff]
          %v334 = vld [vmem:[%s1 + $0x68] sm:$0xff]
          %v335 = vld [vmem:[%s1 + $0x70] sm:$0xff]
          %v336 = vld [vmem:[%s1 + $0x78] sm:$0xff]
          %v337 = vld [vmem:[%s1 + $0x80] sm:$0xff]
          %v338 = vld [vmem:[%s1 + $0x88] sm:$0xff]
          %v339 = vld [vmem:[%s1 + $0x90] sm:$0xff]
          %v340 = vld [vmem:[%s1 + $0x98] sm:$0xff]
          %v341 = vld [vmem:[%s1 + $0xa0] sm:$0xff]
          %v342 = vld [vmem:[%s1 + $0xa8] sm:$0xff]
          %v343 = vld [vmem:[%s1 + $0xb0] sm:$0xff]
          %v344 = vld [vmem:[%s1 + $0xb8] sm:$0xff]
          %v345 = vld [vmem:[%s1 + $0xc0] sm:$0xff]
          %v346 = vld [vmem:[%s1 + $0xc8] sm:$0xff]
          %v347 = vld [vmem:[%s1 + $0xd0] sm:$0xff]
          %v348 = vld [vmem:[%s1 + $0xd8] sm:$0xff]
          %v349 = vld [vmem:[%s1 + $0xe0] sm:$0xff]
          %v350 = vld [vmem:[%s1 + $0xe8] sm:$0xff]
          %v351 = vld [vmem:[%s1 + $0xf0] sm:$0xff]
          %v352 = vld [vmem:[%s1 + $0xf8] sm:$0xff]
          %v353 = vld [vmem:[%s1 + $0x100] sm:$0xff]
          %v354 = vld [vmem:[%s1 + $0x108] sm:$0xff]
          %v355 = vld [vmem:[%s1 + $0x110] sm:$0xff]
          %v356 = vld [vmem:[%s1 + $0x118] sm:$0xff]
          %v357 = vld [vmem:[%s1 + $0x120] sm:$0xff]
          %v358 = vld [vmem:[%s1 + $0x128] sm:$0xff]
          %v359 = vld [vmem:[%s1 + $0x130] sm:$0xff]
          %v360 = vld [vmem:[%s1 + $0x138] sm:$0xff]
          %v361 = vld [vmem:[%s1 + $0x140] sm:$0xff]
          %v362 = vld [vmem:[%s1 + $0x148] sm:$0xff]
          %v363 = vld [vmem:[%s1 + $0x150] sm:$0xff]
          %v364 = vld [vmem:[%s1 + $0x158] sm:$0xff]
          %v365 = vld [vmem:[%s1 + $0x160] sm:$0xff]
          %v366 = vld [vmem:[%s1 + $0x168] sm:$0xff]
          %v367 = vld [vmem:[%s1 + $0x170] sm:$0xff]
          %v368 = vld [vmem:[%s1 + $0x178] sm:$0xff]
          %v369 = vld [vmem:[%s1 + $0x180] sm:$0xff]
          %v370 = vld [vmem:[%s1 + $0x188] sm:$0xff]
          %v371 = vld [vmem:[%s1 + $0x190] sm:$0xff]
          %v372 = vld [vmem:[%s1 + $0x198] sm:$0xff]
          %v373 = vld [vmem:[%s1 + $0x1a0] sm:$0xff]
          %v374 = vld [vmem:[%s1 + $0x1a8] sm:$0xff]
          %v375 = vld [vmem:[%s1 + $0x1b0] sm:$0xff]
          %v376 = vld [vmem:[%s1 + $0x1b8] sm:$0xff]
          %v377 = vld [vmem:[%s1 + $0x1c0] sm:$0xff]
          %v378 = vld [vmem:[%s1 + $0x1c8] sm:$0xff]
          %v379 = vld [vmem:[%s1 + $0x1d0] sm:$0xff]
          %v380 = vld [vmem:[%s1 + $0x1d8] sm:$0xff]
          %v381 = vld [vmem:[%s1 + $0x1e0] sm:$0xff]
          %v382 = vld [vmem:[%s1 + $0x1e8] sm:$0xff]
          %v383 = vld [vmem:[%s1 + $0x1f0] sm:$0xff]
          %v384 = vld [vmem:[%s1 + $0x1f8] sm:$0xff]
          %v385 = vld [vmem:[%s1 + $0x200] sm:$0xff]
          %v386 = vld [vmem:[%s1 + $0x208] sm:$0xff]
          %v387 = vld [vmem:[%s1 + $0x210] sm:$0xff]
          %v388 = vld [vmem:[%s1 + $0x218] sm:$0xff]
          %v389 = vld [vmem:[%s1 + $0x220] sm:$0xff]
          %v390 = vld [vmem:[%s1 + $0x228] sm:$0xff]
          %v391 = vld [vmem:[%s1 + $0x230] sm:$0xff]
          %v392 = vld [vmem:[%s1 + $0x238] sm:$0xff]
          %v393 = vld [vmem:[%s1 + $0x240] sm:$0xff]
          %v394 = vld [vmem:[%s1 + $0x248] sm:$0xff]
          %v395 = vld [vmem:[%s1 + $0x250] sm:$0xff]
          %v396 = vld [vmem:[%s1 + $0x258] sm:$0xff]
          %v397 = vld [vmem:[%s1 + $0x260] sm:$0xff]
          %v398 = vld [vmem:[%s1 + $0x268] sm:$0xff]
          %v399 = vld [vmem:[%s1 + $0x270] sm:$0xff]
          %v400 = vld [vmem:[%s1 + $0x278] sm:$0xff]
          %v401 = vld [vmem:[%s1 + $0x280] sm:$0xff]
          %v402 = vld [vmem:[%s1 + $0x288] sm:$0xff]
          %v403 = vld [vmem:[%s1 + $0x290] sm:$0xff]
          %v404 = vld [vmem:[%s1 + $0x298] sm:$0xff]
          %v405 = vld [vmem:[%s1 + $0x2a0] sm:$0xff]
          %v406 = vld [vmem:[%s1 + $0x2a8] sm:$0xff]
          %v407 = vld [vmem:[%s1 + $0x2b0] sm:$0xff]
          %v408 = vld [vmem:[%s1 + $0x2b8] sm:$0xff]
          %v409 = vld [vmem:[%s1 + $0x2c0] sm:$0xff]
          %v410 = vld [vmem:[%s1 + $0x2c8] sm:$0xff]
          %v411 = vld [vmem:[%s1 + $0x2d0] sm:$0xff]
          %v412 = vld [vmem:[%s1 + $0x2d8] sm:$0xff]
          %v413 = vld [vmem:[%s1 + $0x2e0] sm:$0xff]
          %v414 = vld [vmem:[%s1 + $0x2e8] sm:$0xff]
          %v415 = vld [vmem:[%s1 + $0x2f0] sm:$0xff]
          %v416 = vld [vmem:[%s1 + $0x2f8] sm:$0xff]
          %v417 = vld [vmem:[%s1 + $0x300] sm:$0xff]
          %v418 = vld [vmem:[%s1 + $0x308] sm:$0xff]
          %v419 = vld [vmem:[%s1 + $0x310] sm:$0xff]
          %v420 = vld [vmem:[%s1 + $0x318] sm:$0xff]
          %v421 = vld [vmem:[%s1 + $0x320] sm:$0xff]
          %v422 = vld [vmem:[%s1 + $0x328] sm:$0xff]
          %v423 = vld [vmem:[%s1 + $0x330] sm:$0xff]
          %v424 = vld [vmem:[%s1 + $0x338] sm:$0xff]
          %v425 = vld [vmem:[%s1 + $0x340] sm:$0xff]
          %v426 = vld [vmem:[%s1 + $0x348] sm:$0xff]
          %v427 = vld [vmem:[%s1 + $0x350] sm:$0xff]
          %v428 = vld [vmem:[%s1 + $0x358] sm:$0xff]
          %v429 = vld [vmem:[%s1 + $0x360] sm:$0xff]
          %v430 = vld [vmem:[%s1 + $0x368] sm:$0xff]
          %v431 = vld [vmem:[%s1 + $0x370] sm:$0xff]
          %v432 = vld [vmem:[%s1 + $0x378] sm:$0xff]
          %v433 = vld [vmem:[%s1 + $0x380] sm:$0xff]
          %v434 = vld [vmem:[%s1 + $0x388] sm:$0xff]
          %v435 = vld [vmem:[%s1 + $0x390] sm:$0xff]
          %v436 = vld [vmem:[%s1 + $0x398] sm:$0xff]
          %v437 = vld [vmem:[%s1 + $0x3a0] sm:$0xff]
          %v438 = vld [vmem:[%s1 + $0x3a8] sm:$0xff]
          %v439 = vld [vmem:[%s1 + $0x3b0] sm:$0xff]
          %v440 = vld [vmem:[%s1 + $0x3b8] sm:$0xff]
          %v441 = vld [vmem:[%s1 + $0x3c0] sm:$0xff]
          %v442 = vld [vmem:[%s1 + $0x3c8] sm:$0xff]
          %v443 = vld [vmem:[%s1 + $0x3d0] sm:$0xff]
          %v444 = vld [vmem:[%s1 + $0x3d8] sm:$0xff]
          %v445 = vld [vmem:[%s1 + $0x3e0] sm:$0xff]
          %v446 = vld [vmem:[%s1 + $0x3e8] sm:$0xff]
          %v447 = vld [vmem:[%s1 + $0x3f0] sm:$0xff]
          %v448 = vld [vmem:[%s1 + $0x3f8] sm:$0xff]
          %v449 = vld [vmem:[%s2] sm:$0x1]
          %v451 = vlaneseq
          %v452 = vshrl.u32 %v451, 7
          %v453 = vsub.s32 0, %v452
          %v454 = vrot.slane %v449, %v453
          %456 = vmatprep.subr.mxu0 0.0
          %457 = vmatpush1.msra.mxu0 %v336
          %458 = vmatprep.subr.mxu0 0.0
          %459 = vmatpush1.msra.mxu0 %v335
          %460 = vmatprep.subr.mxu0 0.0
          %461 = vmatpush1.msra.mxu0 %v334
          %462 = vmatprep.subr.mxu0 0.0
          %463 = vmatpush1.msra.mxu0 %v333
          %464 = vmatprep.subr.mxu0 0.0
          %465 = vmatpush1.msra.mxu0 %v332
          %466 = vmatprep.subr.mxu0 0.0
          %467 = vmatpush1.msra.mxu0 %v331
          %468 = vmatprep.subr.mxu0 0.0
          %469 = vmatpush1.msra.mxu0 %v330
          %470 = vmatprep.subr.mxu0 0.0
          %471 = vmatpush1.msra.mxu0 %v329
          %472 = vmatprep.subr.mxu0 0.0
          %473 = vmatpush1.msra.mxu0 %v328
          %474 = vmatprep.subr.mxu0 0.0
          %475 = vmatpush1.msra.mxu0 %v327
          %476 = vmatprep.subr.mxu0 0.0
          %477 = vmatpush1.msra.mxu0 %v326
          %478 = vmatprep.subr.mxu0 0.0
          %479 = vmatpush1.msra.mxu0 %v325
          %480 = vmatprep.subr.mxu0 0.0
          %481 = vmatpush1.msra.mxu0 %v324
          %482 = vmatprep.subr.mxu0 0.0
          %483 = vmatpush1.msra.mxu0 %v323
          %484 = vmatprep.subr.mxu0 0.0
          %485 = vmatpush1.msra.mxu0 %v322
          %486 = vmatprep.subr.mxu0 0.0
          %487 = vmatpush1.msra.mxu0 %v321
          %488 = vmatprep.subr.mxu0 0.0
          %489 = vmatpush2.msra.mxu0 %v352
          %490 = vmatprep.subr.mxu0 0.0
          %491 = vmatpush2.msra.mxu0 %v351
          %492 = vmatprep.subr.mxu0 0.0
          %493 = vmatpush2.msra.mxu0 %v350
          %494 = vmatprep.subr.mxu0 0.0
          %495 = vmatpush2.msra.mxu0 %v349
          %496 = vmatprep.subr.mxu0 0.0
          %497 = vmatpush2.msra.mxu0 %v348
          %498 = vmatprep.subr.mxu0 0.0
          %499 = vmatpush2.msra.mxu0 %v347
          %500 = vmatprep.subr.mxu0 0.0
          %501 = vmatpush2.msra.mxu0 %v346
          %502 = vmatprep.subr.mxu0 0.0
          %503 = vmatpush2.msra.mxu0 %v345
          %504 = vmatprep.subr.mxu0 0.0
          %505 = vmatpush2.msra.mxu0 %v344
          %506 = vmatprep.subr.mxu0 0.0
          %507 = vmatpush2.msra.mxu0 %v343
          %508 = vmatprep.subr.mxu0 0.0
          %509 = vmatpush2.msra.mxu0 %v342
          %510 = vmatprep.subr.mxu0 0.0
          %511 = vmatpush2.msra.mxu0 %v341
          %512 = vmatprep.subr.mxu0 0.0
          %513 = vmatpush2.msra.mxu0 %v340
          %514 = vmatprep.subr.mxu0 0.0
          %515 = vmatpush2.msra.mxu0 %v339
          %516 = vmatprep.subr.mxu0 0.0
          %517 = vmatpush2.msra.mxu0 %v338
          %518 = vmatprep.subr.mxu0 0.0
          %519 = vmatpush2.msra.mxu0 %v337
          %520 = vmatprep.mubr.f32.mxu0 %v314
          %521 = vmatmul.mubr.f32.gmra.mxu0 %v313
          %v522 = vpop.f32.mrf.mxu0
          %v523 = vadd.f32 %v454, %v522
          %v524 = vpop.f32.mrf.mxu0
          %525 = vdwg.mxu0
          %526 = vmatprep.subr.mxu0 0.0
          %527 = vmatpush1.msra.mxu0 %v368
          %528 = vmatprep.subr.mxu0 0.0
          %529 = vmatpush1.msra.mxu0 %v367
          %530 = vmatprep.subr.mxu0 0.0
          %531 = vmatpush1.msra.mxu0 %v366
          %532 = vmatprep.subr.mxu0 0.0
          %533 = vmatpush1.msra.mxu0 %v365
          %534 = vmatprep.subr.mxu0 0.0
          %535 = vmatpush1.msra.mxu0 %v364
          %536 = vmatprep.subr.mxu0 0.0
          %537 = vmatpush1.msra.mxu0 %v363
          %538 = vmatprep.subr.mxu0 0.0
          %539 = vmatpush1.msra.mxu0 %v362
          %540 = vmatprep.subr.mxu0 0.0
          %541 = vmatpush1.msra.mxu0 %v361
          %542 = vmatprep.subr.mxu0 0.0
          %543 = vmatpush1.msra.mxu0 %v360
          %544 = vmatprep.subr.mxu0 0.0
          %545 = vmatpush1.msra.mxu0 %v359
          %546 = vmatprep.subr.mxu0 0.0
          %547 = vmatpush1.msra.mxu0 %v358
          %548 = vmatprep.subr.mxu0 0.0
          %549 = vmatpush1.msra.mxu0 %v357
          %550 = vmatprep.subr.mxu0 0.0
          %551 = vmatpush1.msra.mxu0 %v356
          %552 = vmatprep.subr.mxu0 0.0
          %553 = vmatpush1.msra.mxu0 %v355
          %554 = vmatprep.subr.mxu0 0.0
          %555 = vmatpush1.msra.mxu0 %v354
          %556 = vmatprep.subr.mxu0 0.0
          %557 = vmatpush1.msra.mxu0 %v353
          %558 = vmatprep.subr.mxu0 0.0
          %559 = vmatpush2.msra.mxu0 %v384
          %560 = vmatprep.subr.mxu0 0.0
          %561 = vmatpush2.msra.mxu0 %v383
          %562 = vmatprep.subr.mxu0 0.0
          %563 = vmatpush2.msra.mxu0 %v382
          %564 = vmatprep.subr.mxu0 0.0
          %565 = vmatpush2.msra.mxu0 %v381
          %566 = vmatprep.subr.mxu0 0.0
          %567 = vmatpush2.msra.mxu0 %v380
          %568 = vmatprep.subr.mxu0 0.0
          %569 = vmatpush2.msra.mxu0 %v379
          %570 = vmatprep.subr.mxu0 0.0
          %571 = vmatpush2.msra.mxu0 %v378
          %572 = vmatprep.subr.mxu0 0.0
          %573 = vmatpush2.msra.mxu0 %v377
          %574 = vmatprep.subr.mxu0 0.0
          %575 = vmatpush2.msra.mxu0 %v376
          %576 = vmatprep.subr.mxu0 0.0
          %577 = vmatpush2.msra.mxu0 %v375
          %578 = vmatprep.subr.mxu0 0.0
          %579 = vmatpush2.msra.mxu0 %v374
          %580 = vmatprep.subr.mxu0 0.0
          %581 = vmatpush2.msra.mxu0 %v373
          %582 = vmatprep.subr.mxu0 0.0
          %583 = vmatpush2.msra.mxu0 %v372
          %584 = vmatprep.subr.mxu0 0.0
          %585 = vmatpush2.msra.mxu0 %v371
          %586 = vmatprep.subr.mxu0 0.0
          %587 = vmatpush2.msra.mxu0 %v370
          %588 = vmatprep.subr.mxu0 0.0
          %589 = vmatpush2.msra.mxu0 %v369
          %590 = vmatprep.mubr.f32.mxu0 %v316
          %591 = vmatmul.mubr.f32.gmra.mxu0 %v315
          %v592 = vpop.f32.mrf.mxu0
          %v593 = vadd.f32 %v523, %v592
          %v594 = vpop.f32.mrf.mxu0
          %595 = vdwg.mxu0
          %596 = vmatprep.subr.mxu0 0.0
          %597 = vmatpush1.msra.mxu0 %v400
          %598 = vmatprep.subr.mxu0 0.0
          %599 = vmatpush1.msra.mxu0 %v399
          %600 = vmatprep.subr.mxu0 0.0
          %601 = vmatpush1.msra.mxu0 %v398
          %602 = vmatprep.subr.mxu0 0.0
          %603 = vmatpush1.msra.mxu0 %v397
          %604 = vmatprep.subr.mxu0 0.0
          %605 = vmatpush1.msra.mxu0 %v396
          %606 = vmatprep.subr.mxu0 0.0
          %607 = vmatpush1.msra.mxu0 %v395
          %608 = vmatprep.subr.mxu0 0.0
          %609 = vmatpush1.msra.mxu0 %v394
          %610 = vmatprep.subr.mxu0 0.0
          %611 = vmatpush1.msra.mxu0 %v393
          %612 = vmatprep.subr.mxu0 0.0
          %613 = vmatpush1.msra.mxu0 %v392
          %614 = vmatprep.subr.mxu0 0.0
          %615 = vmatpush1.msra.mxu0 %v391
          %616 = vmatprep.subr.mxu0 0.0
          %617 = vmatpush1.msra.mxu0 %v390
          %618 = vmatprep.subr.mxu0 0.0
          %619 = vmatpush1.msra.mxu0 %v389
          %620 = vmatprep.subr.mxu0 0.0
          %621 = vmatpush1.msra.mxu0 %v388
          %622 = vmatprep.subr.mxu0 0.0
          %623 = vmatpush1.msra.mxu0 %v387
          %624 = vmatprep.subr.mxu0 0.0
          %625 = vmatpush1.msra.mxu0 %v386
          %626 = vmatprep.subr.mxu0 0.0
          %627 = vmatpush1.msra.mxu0 %v385
          %628 = vmatprep.subr.mxu0 0.0
          %629 = vmatpush2.msra.mxu0 %v416
          %630 = vmatprep.subr.mxu0 0.0
          %631 = vmatpush2.msra.mxu0 %v415
          %632 = vmatprep.subr.mxu0 0.0
          %633 = vmatpush2.msra.mxu0 %v414
          %634 = vmatprep.subr.mxu0 0.0
          %635 = vmatpush2.msra.mxu0 %v413
          %636 = vmatprep.subr.mxu0 0.0
          %637 = vmatpush2.msra.mxu0 %v412
          %638 = vmatprep.subr.mxu0 0.0
          %639 = vmatpush2.msra.mxu0 %v411
          %640 = vmatprep.subr.mxu0 0.0
          %641 = vmatpush2.msra.mxu0 %v410
          %642 = vmatprep.subr.mxu0 0.0
          %643 = vmatpush2.msra.mxu0 %v409
          %644 = vmatprep.subr.mxu0 0.0
          %645 = vmatpush2.msra.mxu0 %v408
          %646 = vmatprep.subr.mxu0 0.0
          %647 = vmatpush2.msra.mxu0 %v407
          %648 = vmatprep.subr.mxu0 0.0
          %649 = vmatpush2.msra.mxu0 %v406
          %650 = vmatprep.subr.mxu0 0.0
          %651 = vmatpush2.msra.mxu0 %v405
          %652 = vmatprep.subr.mxu0 0.0
          %653 = vmatpush2.msra.mxu0 %v404
          %654 = vmatprep.subr.mxu0 0.0
          %655 = vmatpush2.msra.mxu0 %v403
          %656 = vmatprep.subr.mxu0 0.0
          %657 = vmatpush2.msra.mxu0 %v402
          %658 = vmatprep.subr.mxu0 0.0
          %659 = vmatpush2.msra.mxu0 %v401
          %660 = vmatprep.mubr.f32.mxu0 %v318
          %661 = vmatmul.mubr.f32.gmra.mxu0 %v317
          %v662 = vpop.f32.mrf.mxu0
          %v663 = vadd.f32 %v593, %v662
          %v664 = vpop.f32.mrf.mxu0
          %665 = vdwg.mxu0
          %666 = vmatprep.subr.mxu0 0.0
          %667 = vmatpush1.msra.mxu0 %v432
          %668 = vmatprep.subr.mxu0 0.0
          %669 = vmatpush1.msra.mxu0 %v431
          %670 = vmatprep.subr.mxu0 0.0
          %671 = vmatpush1.msra.mxu0 %v430
          %672 = vmatprep.subr.mxu0 0.0
          %673 = vmatpush1.msra.mxu0 %v429
          %674 = vmatprep.subr.mxu0 0.0
          %675 = vmatpush1.msra.mxu0 %v428
          %676 = vmatprep.subr.mxu0 0.0
          %677 = vmatpush1.msra.mxu0 %v427
          %678 = vmatprep.subr.mxu0 0.0
          %679 = vmatpush1.msra.mxu0 %v426
          %680 = vmatprep.subr.mxu0 0.0
          %681 = vmatpush1.msra.mxu0 %v425
          %682 = vmatprep.subr.mxu0 0.0
          %683 = vmatpush1.msra.mxu0 %v424
          %684 = vmatprep.subr.mxu0 0.0
          %685 = vmatpush1.msra.mxu0 %v423
          %686 = vmatprep.subr.mxu0 0.0
          %687 = vmatpush1.msra.mxu0 %v422
          %688 = vmatprep.subr.mxu0 0.0
          %689 = vmatpush1.msra.mxu0 %v421
          %690 = vmatprep.subr.mxu0 0.0
          %691 = vmatpush1.msra.mxu0 %v420
          %692 = vmatprep.subr.mxu0 0.0
          %693 = vmatpush1.msra.mxu0 %v419
          %694 = vmatprep.subr.mxu0 0.0
          %695 = vmatpush1.msra.mxu0 %v418
          %696 = vmatprep.subr.mxu0 0.0
          %697 = vmatpush1.msra.mxu0 %v417
          %698 = vmatprep.subr.mxu0 0.0
          %699 = vmatpush2.msra.mxu0 %v448
          %700 = vmatprep.subr.mxu0 0.0
          %701 = vmatpush2.msra.mxu0 %v447
          %702 = vmatprep.subr.mxu0 0.0
          %703 = vmatpush2.msra.mxu0 %v446
          %704 = vmatprep.subr.mxu0 0.0
          %705 = vmatpush2.msra.mxu0 %v445
          %706 = vmatprep.subr.mxu0 0.0
          %707 = vmatpush2.msra.mxu0 %v444
          %708 = vmatprep.subr.mxu0 0.0
          %709 = vmatpush2.msra.mxu0 %v443
          %710 = vmatprep.subr.mxu0 0.0
          %711 = vmatpush2.msra.mxu0 %v442
          %712 = vmatprep.subr.mxu0 0.0
          %713 = vmatpush2.msra.mxu0 %v441
          %714 = vmatprep.subr.mxu0 0.0
          %715 = vmatpush2.msra.mxu0 %v440
          %716 = vmatprep.subr.mxu0 0.0
          %717 = vmatpush2.msra.mxu0 %v439
          %718 = vmatprep.subr.mxu0 0.0
          %719 = vmatpush2.msra.mxu0 %v438
          %720 = vmatprep.subr.mxu0 0.0
          %721 = vmatpush2.msra.mxu0 %v437
          %722 = vmatprep.subr.mxu0 0.0
          %723 = vmatpush2.msra.mxu0 %v436
          %724 = vmatprep.subr.mxu0 0.0
          %725 = vmatpush2.msra.mxu0 %v435
          %726 = vmatprep.subr.mxu0 0.0
          %727 = vmatpush2.msra.mxu0 %v434
          %728 = vmatprep.subr.mxu0 0.0
          %729 = vmatpush2.msra.mxu0 %v433
          %730 = vmatprep.mubr.f32.mxu0 %v320
          %731 = vmatmul.mubr.f32.gmra.mxu0 %v319
          %v732 = vpop.f32.mrf.mxu0
          %v733 = vadd.f32 %v663, %v732
          %v734 = vpop.f32.mrf.mxu0
          %735 = vdwg.mxu0
          %vm736 = vcmask 261120
          %737 = vst.msk [vmem:[#allocation2] sm:$0xff] %vm736, %v733
          %v738 = vmul.f32 %v733, %v733
          %v739 = vsel %vm736, %v738, 0.0
          %740 = vadd.xlane.f32.xlu0 %v739
          %v741 = vpop.xlane.xlu0 %740
          %vm742 = vcmask 7168
          %743 = vst.msk [vmem:[#allocation3] sm:$0xff] %vm742, %v741
          %744 = vst [vmem:[#allocation5] sm:$0xff] inf
        $region82: #{tpu_custom_call.1} parent=73 // pred_fallthru
          _
        %v745 = vld [vmem:[#allocation2] sm:$0xff]
        %v746 = vld [vmem:[%s273] sm:$0xff]
        %v747 = vld [vmem:[%s273 + $0x8] sm:$0xff]
        %v748 = vld [vmem:[%s273 + $0x10] sm:$0xff]
        %v749 = vld [vmem:[%s273 + $0x18] sm:$0xff]
        %vm750 = vcmask 261120
        %v752 = vsel %vm750, %v745, 0
        %754 = vmatprep.subr.mxu0 0.0
        %755 = vmatpush1.msra.mxu0 0.0
        %756 = vmatprep.subr.mxu0 0.0
        %757 = vmatpush1.msra.mxu0 0.0
        %758 = vmatprep.subr.mxu0 0.0
        %759 = vmatpush1.msra.mxu0 0.0
        %760 = vmatprep.subr.mxu0 0.0
        %761 = vmatpush1.msra.mxu0 0.0
        %762 = vmatprep.subr.mxu0 0.0
        %763 = vmatpush1.msra.mxu0 0.0
        %764 = vmatprep.subr.mxu0 0.0
        %765 = vmatpush1.msra.mxu0 0.0
        %766 = vmatprep.subr.mxu0 0.0
        %767 = vmatpush1.msra.mxu0 0.0
        %768 = vmatprep.subr.mxu0 0.0
        %769 = vmatpush1.msra.mxu0 0.0
        %770 = vmatprep.subr.mxu0 0.0
        %771 = vmatpush1.msra.mxu0 0.0
        %772 = vmatprep.subr.mxu0 0.0
        %773 = vmatpush1.msra.mxu0 0.0
        %774 = vmatprep.subr.mxu0 0.0
        %775 = vmatpush1.msra.mxu0 0.0
        %776 = vmatprep.subr.mxu0 0.0
        %777 = vmatpush1.msra.mxu0 0.0
        %778 = vmatprep.subr.mxu0 0.0
        %779 = vmatpush1.msra.mxu0 %v749
        %780 = vmatprep.subr.mxu0 0.0
        %781 = vmatpush1.msra.mxu0 %v748
        %782 = vmatprep.subr.mxu0 0.0
        %783 = vmatpush1.msra.mxu0 %v747
        %784 = vmatprep.subr.mxu0 0.0
        %785 = vmatpush1.msra.mxu0 %v746
        %786 = vmatprep.subr.mxu0 0.0
        %787 = vmatpush2.msra.mxu0 0.0
        %788 = vmatprep.subr.mxu0 0.0
        %789 = vmatpush2.msra.mxu0 0.0
        %790 = vmatprep.subr.mxu0 0.0
        %791 = vmatpush2.msra.mxu0 0.0
        %792 = vmatprep.subr.mxu0 0.0
        %793 = vmatpush2.msra.mxu0 0.0
        %794 = vmatprep.subr.mxu0 0.0
        %795 = vmatpush2.msra.mxu0 0.0
        %796 = vmatprep.subr.mxu0 0.0
        %797 = vmatpush2.msra.mxu0 0.0
        %798 = vmatprep.subr.mxu0 0.0
        %799 = vmatpush2.msra.mxu0 0.0
        %800 = vmatprep.subr.mxu0 0.0
        %801 = vmatpush2.msra.mxu0 0.0
        %802 = vmatprep.subr.mxu0 0.0
        %803 = vmatpush2.msra.mxu0 0.0
        %804 = vmatprep.subr.mxu0 0.0
        %805 = vmatpush2.msra.mxu0 0.0
        %806 = vmatprep.subr.mxu0 0.0
        %807 = vmatpush2.msra.mxu0 0.0
        %808 = vmatprep.subr.mxu0 0.0
        %809 = vmatpush2.msra.mxu0 0.0
        %810 = vmatprep.subr.mxu0 0.0
        %811 = vmatpush2.msra.mxu0 0.0
        %812 = vmatprep.subr.mxu0 0.0
        %813 = vmatpush2.msra.mxu0 0.0
        %814 = vmatprep.subr.mxu0 0.0
        %815 = vmatpush2.msra.mxu0 0.0
        %816 = vmatprep.subr.mxu0 0.0
        %817 = vmatpush2.msra.mxu0 0.0
        %818 = vmatprep.mubr.f32.mxu0 0.0
        %819 = vmatmul.mubr.f32.gmra.mxu0 %v752
        %v820 = vpop.f32.mrf.mxu0
        %v821 = vadd.f32 0.0, %v820
        %v822 = vpop.f32.mrf.mxu0
        %823 = vdwg.mxu0
        %v824 = vld [vmem:[%s308] sm:$0x1]
        %v825 = vld [vmem:[#allocation3] sm:$0xff]
        %v827 = vlaneseq
        %v828 = vshrl.u32 %v827, 7
        %v829 = vsub.s32 0, %v828
        %v830 = vrot.slane %v824, %v829
        %833 = vset.pattern.permute.xlu0 0
        %834 = vperm.xlu0 %833, %v825
        %v835 = vpop.permute.xlu0 %834
        %v837 = vadd.f32 %v830, %v835
        %v838 = vadd.f32 %v837, %v821
        %v839 = vld [vmem:[#allocation5] sm:$0xff]
        %v840 = vlaneseq
        %v841 = vand.u32 %v840, 127
        %v842 = vadd.s32 %v841, 128
        %v843 = vmin.f32 %v839, %v838
        %844 = vmin.xlane.f32.xlu0 %v843
        %v845 = vpop.xlane.xlu0 %844
        %vm846 = vcmp.eq.f32.partialorder %v839, %v845
        %vm847 = vcmp.eq.f32.partialorder %v838, %v845
        %v848 = vsel %vm846, %v841, 256
        %v849 = vsel %vm847, %v842, 256
        %vm850 = vcmp.lt.s32.totalorder %v848, %v849
        %v851 = vsel %vm850, %v848, %v849
        %v852 = vand.u32 %v851, 65535
        %v853 = vshra.s32 %v851, 16
        %v854 = vcvt.s32.f32 %v852
        %v855 = vcvt.s32.f32 %v853
        %856 = vmin.xlane.f32.xlu0 %v855
        %v857 = vpop.xlane.xlu0 %856
        %vm858 = vcmp.eq.f32.partialorder %v855, %v857
        %v859 = vsel %vm858, %v854, inf
        %860 = vmin.xlane.f32.xlu0 %v859
        %v861 = vpop.xlane.xlu0 %860
        %v862 = vcvt.f32.s32 %v861
        %v863 = vcvt.f32.s32 %v857
        %v864 = vshll.u32 %v863, 16
        %v865 = vadd.s32 %v864, %v862
        %vm866 = vcmp.eq.s32.totalorder %v841, %v865
        %vm867 = vcmp.eq.s32.totalorder %v842, %v865
        %v868 = vsel %vm866, inf, %v839
        %v869 = vsel %vm867, inf, %v838
        %v870 = vmin.f32 %v868, %v869
        %871 = vmin.xlane.f32.xlu0 %v870
        %v872 = vpop.xlane.xlu0 %871
        %vm873 = vcmp.eq.f32.partialorder %v868, %v872
        %vm874 = vcmp.eq.f32.partialorder %v869, %v872
        %v875 = vsel %vm873, %v841, 256
        %v876 = vsel %vm874, %v842, 256
        %vm877 = vcmp.lt.s32.totalorder %v875, %v876
        %v878 = vsel %vm877, %v875, %v876
        %v879 = vand.u32 %v878, 65535
        %v880 = vshra.s32 %v878, 16
        %v881 = vcvt.s32.f32 %v879
        %v882 = vcvt.s32.f32 %v880
        %883 = vmin.xlane.f32.xlu0 %v882
        %v884 = vpop.xlane.xlu0 %883
        %vm885 = vcmp.eq.f32.partialorder %v882, %v884
        %v886 = vsel %vm885, %v881, inf
        %887 = vmin.xlane.f32.xlu0 %v886
        %v888 = vpop.xlane.xlu0 %887
        %v889 = vcvt.f32.s32 %v888
        %v890 = vcvt.f32.s32 %v884
        %v891 = vshll.u32 %v890, 16
        %v892 = vadd.s32 %v891, %v889
        %vm893 = vcmp.eq.s32.totalorder %v841, %v892
        %vm894 = vcmp.eq.s32.totalorder %v842, %v892
        %v895 = vsel %vm893, inf, %v868
        %v896 = vsel %vm894, inf, %v869
        %v897 = vmin.f32 %v895, %v896
        %898 = vmin.xlane.f32.xlu0 %v897
        %v899 = vpop.xlane.xlu0 %898
        %vm900 = vcmask 7168
        %v901 = vsel %vm900, %v845, %v872
        %vm902 = vcmask 15360
        %v903 = vsel %vm902, %v901, %v899
        %vm904 = vcmask 23552
        %v905 = vsel %vm904, %v903, inf
        %906 = vst [vmem:[#allocation5] sm:$0xff] %v905
        %p907 = scmp.eq.s32.totalorder %s22, 2
        // Predicated region
        $region83: #{tpu_custom_call.1} parent=73 // pred_check
          %p908 = pneg %p907
        $region84: #{tpu_custom_call.1} parent=73 // pred_check_branch
          %910 = sbr.rel (%p908) target = $region86
        $region85: #{tpu_custom_call.1} parent=73 // pred_region
          %v911 = vld [vmem:[#allocation5] sm:$0xff]
          %v912 = vmax.f32 %v911, 0.0
          %v913 = vrsqrt.pop %v912
          %v914 = vmul.f32 %v912, %v913
          %vm915 = vcmp.eq.f32.partialorder %v912, inf
          %v916 = vsel %vm915, %v912, %v914
          %vm917 = vcmp.eq.f32.partialorder %v912, 0.0
          %v918 = vand.u32 %v912, 2147483648
          %v919 = vsel %vm917, %v918, %v916
          %vm920 = vcmp.lt.s32.totalorder %v841, 3
          %v921 = vsel %vm920, %v919, 0.0
          %922 = vst [vmem:[#allocation5] sm:$0xff] %v921
        $region86: #{tpu_custom_call.1} parent=73 // pred_fallthru
          _
        // Predicated region
        $region87: #{tpu_custom_call.1} parent=73 // pred_check
          %p923 = pneg %p167
        $region88: #{tpu_custom_call.1} parent=73 // pred_check_branch
          %925 = sbr.rel (%p923) target = $region90
        $region89: #{tpu_custom_call.1} parent=73 // pred_region
          %s927 = ssub.s32 128, 128
          %928 = vsyncadd [#allocation6], %s927
          %s929 = smul.addr %s21, 128
          %s930 = scalar_lea.hbm %s5, %s929
          %s932 = sshll.u32 [#allocation5], 4
          %s933 = int_to_ptr.vmem [resolvable:$true] %s932
          %935 = dma.vmem_to_hbm [thread:$0]  %s933, 128, %s930, [#allocation6]
        $region90: #{tpu_custom_call.1} parent=73 // pred_fallthru
          _
        // Predicated region
        $region91: #{tpu_custom_call.1} parent=73 // pred_check
          %p936 = pneg %p167
        $region92: #{tpu_custom_call.1} parent=73 // pred_check_branch
          %938 = sbr.rel (%p936) target = $region94
        $region93: #{tpu_custom_call.1} parent=73 // pred_region
          %939 = dma.done [#allocation6], 128
        $region94: #{tpu_custom_call.1} parent=73 // pred_fallthru
          _
      $region74: #{tpu_custom_call.1} parent=5 // pred_fallthru
        _
      %p940 = scmp.le.s32.totalorder 2, %s12
      // Predicated region
      $region95: #{tpu_custom_call.1} parent=5 // pred_check
        %p941 = pneg %p940
      $region96: #{tpu_custom_call.1} parent=5 // pred_check_branch
        %943 = sbr.rel (%p941) target = $region98
      $region97: #{tpu_custom_call.1} parent=5 // pred_region
        %s944 = ssub.s32 %s12, 2
      $region98: #{tpu_custom_call.1} parent=5 // pred_fallthru
        _
    $region6: #{tpu_custom_call.1} parent=1 // loop_footer
      %s16 = sadd.s32 1, %s12
    $region7: #{tpu_custom_call.1} parent=1 // loop_footer_branch
      %11 = sbr.rel target = $region3
    $region8: #{tpu_custom_call.1} parent=1 // loop_exit
      _
    %945 = vsyncpa [#allocation6], 1
    %s946 = scalar_lea.sflag [#allocation6], 1
    %947 = vsyncpa %s946, 1

</llo_original>
